<compile_context>
chip_gen: v5e
topology: v5e:2x2
jax: 0.10.0
libtpu: 0.0.40
codegen_flags: <defaults>
</compile_context>

<pallas_src>
import functools

import jax
import jax.numpy as jnp
from jax.experimental import pallas as pl
from jax.experimental.pallas import tpu as pltpu


# --------------------------------------------------------------------------- #
# Kernel
# --------------------------------------------------------------------------- #
def _mha_kernel(x_ref, wqkv_ref, bqkv_ref, wo_ref, bo_ref, o_ref, *,
                num_heads, approx_recip):
    """One grid step processes a block of Bt batch elements.

    x_ref    : (Bt, S, C)  VMEM block
    wqkv_ref : (C, 3C)     fused [Wq | Wk | Wv], already (in, out)
    bqkv_ref : (1, 3C)     fused [bq | bk | bv]
    wo_ref   : (C, C)      output Linear weight, (in, out)
    bo_ref   : (1, C)
    o_ref    : (Bt, S, C)  output block
    """
    Bt, S, C = x_ref.shape
    H = num_heads
    c = C // H
    scale = 1.0 / (c ** 0.5)
    mm_dtype = wqkv_ref.dtype          # f32 (default) or bf16 (v6e/v7x option)

    # ---- fused QKV projection: one lane-dense (Bt*S, 3C) MXU matmul --------
    x2d = x_ref[...].reshape(Bt * S, C)
    qkv = jnp.dot(x2d.astype(mm_dtype), wqkv_ref[...],
                  preferred_element_type=jnp.float32)
    qkv = qkv + bqkv_ref[...].astype(jnp.float32)           # (Bt*S, 3C) f32

    # ---- head-batched attention: (Bt*S, C) -> (Bt*H, S, c), no per-head loop
    def to_heads(t2d):
        return (t2d.reshape(Bt, S, H, c)
                   .transpose(0, 2, 1, 3)
                   .reshape(Bt * H, S, c))

    # fold the 1/sqrt(c) scale into q here: O(Bt*S*C) instead of O(Bt*H*S^2)
    q = to_heads(qkv[:, 0 * C:1 * C] * scale)
    k = to_heads(qkv[:, 1 * C:2 * C])
    v = to_heads(qkv[:, 2 * C:3 * C])

    # batched scores: contraction over the LAST axis of both q and k
    s = jnp.einsum('bqc,bkc->bqk', q.astype(mm_dtype), k.astype(mm_dtype),
                   preferred_element_type=jnp.float32)       # (Bt*H, S, S)
    s = s - jnp.max(s, axis=-1, keepdims=True)
    p = jnp.exp(s)                                           # unnormalized probs
    l = jnp.sum(p, axis=-1, keepdims=True)                   # (Bt*H, S, 1)

    # TODO(synk): attention_dropout / residual_dropout are stochastic;
    # eval-mode identity is used here.
    ctx = jnp.einsum('bqk,bkc->bqc', p.astype(mm_dtype), v.astype(mm_dtype),
                     preferred_element_type=jnp.float32)     # (Bt*H, S, c)
    # Normalize the small (Bt*H, S, c) context instead of the (Bt*H, S, S)
    # probability matrix; approx reciprocal (EUP) only on the bf16 fast path.
    ctx = ctx * pl.reciprocal(l, approx=approx_recip)

    # heads re-merged into a contiguous (Bt*S, C) slab -- no concat
    attn = (ctx.reshape(Bt, H, S, c)
               .transpose(0, 2, 1, 3)
               .reshape(Bt * S, C))

    # ---- single output projection for all heads/batches in the block -------
    out = jnp.dot(attn.astype(mm_dtype), wo_ref[...],
                  preferred_element_type=jnp.float32)
    out = out + bo_ref[...].astype(jnp.float32)
    o_ref[...] = out.reshape(Bt, S, C).astype(o_ref.dtype)


# --------------------------------------------------------------------------- #
# Block / VMEM sizing
# --------------------------------------------------------------------------- #
def _vmem_budget_bytes():
    """Generation-aware usable-VMEM budget (~half of physical capacity)."""
    cap = 64 << 20
    try:
        info = pltpu.get_tpu_info()
        cap = int(getattr(info, "vmem_capacity_bytes", cap))
    except Exception:
        pass
    # v5e/v6e (128 MiB) -> 64 MiB usable; v7x (64 MiB) -> 32 MiB usable.
    return max(8 << 20, cap // 2)


def _pick_block_b(batch, seq, channels, num_heads, weight_bytes, budget_bytes):
    """Largest divisor of `batch` fitting the budget, keeping >=2 grid steps."""
    # f32 footprint per batch element inside the kernel:
    #   x + o (double-buffered) + qkv + q/k/v head copies + ctx + attn + out
    #   ~ 13 * S * C floats, plus scores + probs ~ 2 * H * S^2 floats.
    per_b = 4 * (13 * seq * channels) + 8 * num_heads * seq * seq
    cap = max(1, (budget_bytes - weight_bytes) // max(1, per_b))
    # Keep >=2 grid steps (pipelining / v7x dual-TC) whenever batch allows it.
    min_steps = 2 if batch >= 2 else 1
    best = 1
    for d in range(1, batch + 1):
        if batch % d == 0 and d <= cap and (batch // d) >= min_steps:
            best = d
    return best


# --------------------------------------------------------------------------- #
# Wrapper
# --------------------------------------------------------------------------- #
def fuse_params(params, matmul_dtype=jnp.float32):
    """Fuse/transpose PyTorch-layout weights ONCE (not per forward call)."""
    C = params["wq"].shape[0]
    # PyTorch Linear stores (out, in); pre-transpose to (in, out) and fuse QKV.
    wqkv = jnp.concatenate(
        [params["wq"].T, params["wk"].T, params["wv"].T], axis=1
    ).astype(matmul_dtype)                                    # (C, 3C)
    bqkv = jnp.concatenate(
        [params["bq"], params["bk"], params["bv"]]
    ).reshape(1, 3 * C).astype(jnp.float32)
    wo = params["wo"].T.astype(matmul_dtype)                  # (C, C)
    bo = params["bo"].reshape(1, C).astype(jnp.float32)
    return wqkv, bqkv, wo, bo


def my_multihead_attention(x_sbc, fused, num_heads, matmul_dtype=jnp.float32):
    """x_sbc: (S, B, C) float32, sequence-first like the PyTorch module.

    matmul_dtype: dtype of the fused weights / MXU operands.  Pass
    jnp.bfloat16 on v6e/v7x for ~2x MXU throughput and halved weight traffic;
    softmax / accumulation stay f32 either way (important on v5e).
    """
    S, B, C = x_sbc.shape
    assert C % num_heads == 0
    wqkv, bqkv, wo, bo = fused

    x = jnp.transpose(x_sbc, (1, 0, 2))                       # (B, S, C)

    itemsize = jnp.dtype(matmul_dtype).itemsize
    weight_bytes = (3 * C * C + C * C) * itemsize + 4 * C * 4
    budget = _vmem_budget_bytes()
    Bt = _pick_block_b(B, S, C, num_heads, weight_bytes, budget)
    grid = (B // Bt,)

    cost = pl.CostEstimate(
        flops=int(2 * B * S * C * 3 * C            # fused QKV projection
                  + 4 * B * S * S * C              # q@k^T and p@v over all heads
                  + 2 * B * S * C * C),            # output projection
        transcendentals=int(B * num_heads * S * S),
        bytes_accessed=int(2 * B * S * C * 4                  # x in, y out (f32)
                           + 4 * C * C * itemsize             # fused weights
                           + 4 * C * 4))                      # biases

    # Exact reciprocal on the f32 (testing) path keeps the tight tolerance;
    # the bf16 production path uses the free EUP approx reciprocal.
    approx_recip = (jnp.dtype(matmul_dtype) != jnp.dtype(jnp.float32))

    out_bsc = pl.pallas_call(
        functools.partial(_mha_kernel, num_heads=num_heads,
                          approx_recip=approx_recip),
        out_shape=jax.ShapeDtypeStruct((B, S, C), x.dtype),
        grid_spec=pltpu.PrefetchScalarGridSpec(
            num_scalar_prefetch=0,
            grid=grid,
            in_specs=[
                pl.BlockSpec((Bt, S, C), lambda b: (b, 0, 0)),   # x block
                pl.BlockSpec((C, 3 * C), lambda b: (0, 0)),      # fused Wqkv
                pl.BlockSpec((1, 3 * C), lambda b: (0, 0)),      # fused bqkv
                pl.BlockSpec((C, C), lambda b: (0, 0)),          # Wo
                pl.BlockSpec((1, C), lambda b: (0, 0)),          # bo
            ],
            out_specs=pl.BlockSpec((Bt, S, C), lambda b: (b, 0, 0)),
        ),
        compiler_params=pltpu.CompilerParams(
            dimension_semantics=("parallel",),
            vmem_limit_bytes=int(budget)),
        cost_estimate=cost,
    )(x, wqkv, bqkv, wo, bo)

    return jnp.transpose(out_bsc, (1, 0, 2))                   # back to (S, B, C)


# --------------------------------------------------------------------------- #
# Pure-JAX reference + test harness
# --------------------------------------------------------------------------- #
def _reference(x_sbc, params, num_heads):
    """Pure-JAX reference mirroring the PyTorch forward."""
    S, B, C = x_sbc.shape
    c = C // num_heads
    lin = lambda x, w, b: jnp.einsum("sbi,oi->sbo", x, w) + b
    q = lin(x_sbc, params["wq"], params["bq"]).reshape(S, B, num_heads, c)
    k = lin(x_sbc, params["wk"], params["bk"]).reshape(S, B, num_heads, c)
    v = lin(x_sbc, params["wv"], params["bv"]).reshape(S, B, num_heads, c)
    qk = jnp.einsum("sbhc,tbhc->stbh", q, k) / (c ** 0.5)
    a = jax.nn.softmax(qk, axis=1)
    y = jnp.einsum("stbh,tbhc->sbhc", a, v).reshape(S, B, C)
    return jnp.einsum("sbi,oi->sbo", y, params["wo"]) + params["bo"]


def _init_params(key, channels):
    """Deterministic init mimicking torch.nn.Linear (uniform +/- 1/sqrt(fan_in))."""
    bound = 1.0 / (channels ** 0.5)
    keys = jax.random.split(key, 8)
    u = lambda k, shape: jax.random.uniform(k, shape, jnp.float32, -bound, bound)
    return {
        "wq": u(keys[0], (channels, channels)), "bq": u(keys[1], (channels,)),
        "wk": u(keys[2], (channels, channels)), "bk": u(keys[3], (channels,)),
        "wv": u(keys[4], (channels, channels)), "bv": u(keys[5], (channels,)),
        "wo": u(keys[6], (channels, channels)), "bo": u(keys[7], (channels,)),
    }


if __name__ == "__main__":
    S, B, C, H = 8, 2, 32, 4   # seq, batch, channels, heads

    root = jax.random.PRNGKey(0)
    k_x, k_p = jax.random.split(root)
    x = jax.random.normal(k_x, (S, B, C), dtype=jnp.float32)
    params = _init_params(k_p, C)

    # f32 matmuls here so the tight tolerance check passes; pass
    # matmul_dtype=jnp.bfloat16 on v6e/v7x for the faster MXU path.
    fused = fuse_params(params, matmul_dtype=jnp.float32)
    out = my_multihead_attention(x, fused, H, matmul_dtype=jnp.float32)
    out = jax.block_until_ready(out)

    ref = _reference(x, params, H)
    assert out.shape == (S, B, C)
    assert jnp.allclose(out, ref, atol=2e-4, rtol=2e-4), "mismatch vs reference"

    print("KERNEL_OK")
</pallas_src>

<mosaic_0001>
module attributes {stable_mosaic.version = 11 : i64} {
  func.func @_mha_kernel(%arg0: i32, %arg1: memref<1x8x32xf32, #tpu.memory_space<vmem>>, %arg2: memref<32x96xf32, #tpu.memory_space<vmem>>, %arg3: memref<1x96xf32, #tpu.memory_space<vmem>>, %arg4: memref<32x32xf32, #tpu.memory_space<vmem>>, %arg5: memref<1x32xf32, #tpu.memory_space<vmem>>, %arg6: memref<1x8x32xf32, #tpu.memory_space<vmem>>) attributes {dimension_semantics = [#tpu.dimension_semantics<parallel>], iteration_bounds = array<i64: 2>, scalar_prefetch = 0 : i64, scratch_operands = 0 : i64, tpu.core_type = #tpu.core_type<tc>, window_params = [{transform_indices = @transform_0, window_bounds = array<i64: 1, 8, 32>}, {pipeline_mode = #tpu.pipeline_mode<synchronous>, transform_indices = @transform_1, window_bounds = array<i64: 32, 96>}, {pipeline_mode = #tpu.pipeline_mode<synchronous>, transform_indices = @transform_2, window_bounds = array<i64: 1, 96>}, {pipeline_mode = #tpu.pipeline_mode<synchronous>, transform_indices = @transform_3, window_bounds = array<i64: 32, 32>}, {pipeline_mode = #tpu.pipeline_mode<synchronous>, transform_indices = @transform_4, window_bounds = array<i64: 1, 32>}, {transform_indices = @transform_5, window_bounds = array<i64: 1, 8, 32>}]} {
    %c0 = arith.constant 0 : index
    %c0_0 = arith.constant 0 : index
    %c0_1 = arith.constant 0 : index
    %0 = vector.load %arg1[%c0, %c0_0, %c0_1] : memref<1x8x32xf32, #tpu.memory_space<vmem>>, vector<1x8x32xf32>
    %1 = vector.shape_cast %0 : vector<1x8x32xf32> to vector<8x32xf32>
    %c0_2 = arith.constant 0 : index
    %c0_3 = arith.constant 0 : index
    %2 = vector.load %arg2[%c0_2, %c0_3] : memref<32x96xf32, #tpu.memory_space<vmem>>, vector<32x96xf32>
    %cst = arith.constant dense<0.000000e+00> : vector<8x96xf32>
    %3 = tpu.matmul %1, %2, %cst {dimension_numbers = #tpu.dot_dimension_numbers<[1], [0], [0], [1], [0, 0, 1, 1], [], []>} : vector<8x32xf32>, vector<32x96xf32>, vector<8x96xf32> -> vector<8x96xf32>
    %c0_4 = arith.constant 0 : index
    %c0_5 = arith.constant 0 : index
    %4 = vector.load %arg3[%c0_4, %c0_5] : memref<1x96xf32, #tpu.memory_space<vmem>>, vector<1x96xf32>
    %5 = vector.broadcast %4 : vector<1x96xf32> to vector<8x96xf32>
    %6 = arith.addf %3, %5 : vector<8x96xf32>
    %7 = vector.extract_strided_slice %6 {offsets = [0, 0], sizes = [8, 32], strides = [1, 1]} : vector<8x96xf32> to vector<8x32xf32>
    %cst_6 = arith.constant 0.353553385 : f32
    %8 = vector.broadcast %cst_6 : f32 to vector<8x32xf32>
    %9 = arith.mulf %7, %8 : vector<8x32xf32>
    %10 = vector.shape_cast %9 : vector<8x32xf32> to vector<1x8x4x8xf32>
    %11 = tpu.transpose %10, [0, 2, 1, 3] : vector<1x8x4x8xf32> -> vector<1x4x8x8xf32>
    %12 = vector.shape_cast %11 : vector<1x4x8x8xf32> to vector<4x8x8xf32>
    %13 = vector.extract_strided_slice %6 {offsets = [0, 32], sizes = [8, 32], strides = [1, 1]} : vector<8x96xf32> to vector<8x32xf32>
    %14 = vector.shape_cast %13 : vector<8x32xf32> to vector<1x8x4x8xf32>
    %15 = tpu.transpose %14, [0, 2, 1, 3] : vector<1x8x4x8xf32> -> vector<1x4x8x8xf32>
    %16 = vector.shape_cast %15 : vector<1x4x8x8xf32> to vector<4x8x8xf32>
    %17 = vector.extract_strided_slice %6 {offsets = [0, 64], sizes = [8, 32], strides = [1, 1]} : vector<8x96xf32> to vector<8x32xf32>
    %18 = vector.shape_cast %17 : vector<8x32xf32> to vector<1x8x4x8xf32>
    %19 = tpu.transpose %18, [0, 2, 1, 3] : vector<1x8x4x8xf32> -> vector<1x4x8x8xf32>
    %20 = vector.shape_cast %19 : vector<1x4x8x8xf32> to vector<4x8x8xf32>
    "tpu.trace_start"() <{level = 10 : i32, message = "bqc,bkc->bqk"}> : () -> ()
    %cst_7 = arith.constant dense<0.000000e+00> : vector<4x8x8xf32>
    %21 = tpu.matmul %12, %16, %cst_7 {dimension_numbers = #tpu.dot_dimension_numbers<[2], [2], [1], [1], [0, 0, 0, 1, 1, 1], [0], [0]>} : vector<4x8x8xf32>, vector<4x8x8xf32>, vector<4x8x8xf32> -> vector<4x8x8xf32>
    "tpu.trace_stop"() : () -> ()
    %cst_8 = arith.constant dense<0xFF800000> : vector<4x8xf32>
    %22 = vector.multi_reduction <maximumf>, %21, %cst_8 [2] : vector<4x8x8xf32> to vector<4x8xf32>
    %23 = vector.shape_cast %22 : vector<4x8xf32> to vector<4x8x1xf32>
    %24 = vector.broadcast %23 : vector<4x8x1xf32> to vector<4x8x8xf32>
    %25 = arith.subf %21, %24 : vector<4x8x8xf32>
    %26 = math.exp %25 : vector<4x8x8xf32>
    %cst_9 = arith.constant dense<0.000000e+00> : vector<4x8xf32>
    %27 = vector.multi_reduction <add>, %26, %cst_9 [2] : vector<4x8x8xf32> to vector<4x8xf32>
    %28 = vector.shape_cast %27 : vector<4x8xf32> to vector<4x8x1xf32>
    "tpu.trace_start"() <{level = 10 : i32, message = "bqk,bkc->bqc"}> : () -> ()
    %cst_10 = arith.constant dense<0.000000e+00> : vector<4x8x8xf32>
    %29 = tpu.matmul %26, %20, %cst_10 {dimension_numbers = #tpu.dot_dimension_numbers<[2], [1], [1], [2], [0, 0, 0, 1, 1, 2], [0], [0]>} : vector<4x8x8xf32>, vector<4x8x8xf32>, vector<4x8x8xf32> -> vector<4x8x8xf32>
    "tpu.trace_stop"() : () -> ()
    %30 = tpu.reciprocal %28 : vector<4x8x1xf32> -> vector<4x8x1xf32>
    %31 = vector.broadcast %30 : vector<4x8x1xf32> to vector<4x8x8xf32>
    %32 = arith.mulf %29, %31 : vector<4x8x8xf32>
    %33 = vector.shape_cast %32 : vector<4x8x8xf32> to vector<1x4x8x8xf32>
    %34 = tpu.transpose %33, [0, 2, 1, 3] : vector<1x4x8x8xf32> -> vector<1x8x4x8xf32>
    %35 = vector.shape_cast %34 : vector<1x8x4x8xf32> to vector<8x32xf32>
    %c0_11 = arith.constant 0 : index
    %c0_12 = arith.constant 0 : index
    %36 = vector.load %arg4[%c0_11, %c0_12] : memref<32x32xf32, #tpu.memory_space<vmem>>, vector<32x32xf32>
    %cst_13 = arith.constant dense<0.000000e+00> : vector<8x32xf32>
    %37 = tpu.matmul %35, %36, %cst_13 {dimension_numbers = #tpu.dot_dimension_numbers<[1], [0], [0], [1], [0, 0, 1, 1], [], []>} : vector<8x32xf32>, vector<32x32xf32>, vector<8x32xf32> -> vector<8x32xf32>
    %c0_14 = arith.constant 0 : index
    %c0_15 = arith.constant 0 : index
    %38 = vector.load %arg5[%c0_14, %c0_15] : memref<1x32xf32, #tpu.memory_space<vmem>>, vector<1x32xf32>
    %39 = vector.broadcast %38 : vector<1x32xf32> to vector<8x32xf32>
    %40 = arith.addf %37, %39 : vector<8x32xf32>
    %41 = vector.shape_cast %40 : vector<8x32xf32> to vector<1x8x32xf32>
    %c0_16 = arith.constant 0 : index
    %c0_17 = arith.constant 0 : index
    %c0_18 = arith.constant 0 : index
    %42 = vector.load %arg6[%c0_16, %c0_17, %c0_18] : memref<1x8x32xf32, #tpu.memory_space<vmem>>, vector<1x8x32xf32>
    tpu.vector_store %arg6[%c0_16, %c0_17, %c0_18], %41 {strides = array<i32>} : memref<1x8x32xf32, #tpu.memory_space<vmem>>, vector<1x8x32xf32>,
    return
  }
  func.func @transform_0(%arg0: i32) -> (i32, i32, i32) {
    %c0_i32 = arith.constant 0 : i32
    %c0_i32_0 = arith.constant 0 : i32
    %c0_i32_1 = arith.constant 0 : i32
    return %arg0, %c0_i32, %c0_i32_0 : i32, i32, i32
  }
  func.func @transform_1(%arg0: i32) -> (i32, i32) {
    %c0_i32 = arith.constant 0 : i32
    %c0_i32_0 = arith.constant 0 : i32
    %c0_i32_1 = arith.constant 0 : i32
    return %c0_i32, %c0_i32_0 : i32, i32
  }
  func.func @transform_2(%arg0: i32) -> (i32, i32) {
    %c0_i32 = arith.constant 0 : i32
    %c0_i32_0 = arith.constant 0 : i32
    %c0_i32_1 = arith.constant 0 : i32
    return %c0_i32, %c0_i32_0 : i32, i32
  }
  func.func @transform_3(%arg0: i32) -> (i32, i32) {
    %c0_i32 = arith.constant 0 : i32
    %c0_i32_0 = arith.constant 0 : i32
    %c0_i32_1 = arith.constant 0 : i32
    return %c0_i32, %c0_i32_0 : i32, i32
  }
  func.func @transform_4(%arg0: i32) -> (i32, i32) {
    %c0_i32 = arith.constant 0 : i32
    %c0_i32_0 = arith.constant 0 : i32
    %c0_i32_1 = arith.constant 0 : i32
    return %c0_i32, %c0_i32_0 : i32, i32
  }
  func.func @transform_5(%arg0: i32) -> (i32, i32, i32) {
    %c0_i32 = arith.constant 0 : i32
    %c0_i32_0 = arith.constant 0 : i32
    %c0_i32_1 = arith.constant 0 : i32
    return %arg0, %c0_i32, %c0_i32_0 : i32, i32, i32
  }
}

</mosaic_0001>

<llo_original>
// kernel: tpu_custom_call.1
$region0: #{tpu_custom_call.1}
  #allocation0 [shape = 'u32[]', space=smem, size = 0x4, offset = 0x4, fixed_abs, tag = 'smem constant byte address 0x4 - core index']
  #allocation1 [shape = 'u32[72,128]{1,0:T(1,128)}', space=vmem, size = 0x9000, scoped, tag = 'internal scratch']
  %s0 = inlined_call_operand.hbm [shape: f32[2,8,32], index: 0, kind: input, shape index: {}]
  %s1 = inlined_call_operand.hbm [shape: f32[32,96], index: 1, kind: input, shape index: {}]
  %s2 = inlined_call_operand.vmem [shape: f32[1,96], index: 2, kind: input, shape index: {}]
  %s3 = inlined_call_operand.hbm [shape: f32[32,32], index: 3, kind: input, shape index: {}]
  %s4 = inlined_call_operand.vmem [shape: f32[1,32], index: 4, kind: input, shape index: {}]
  %s5 = inlined_call_operand.hbm [shape: f32[2,8,32], index: 5, kind: output, shape index: {}]
  %s6 = sld [smem:[#allocation0]]
  $region65: #{tpu_custom_call.1} parent=0
    _
  %s8 = ssub.s32 1, %s6
  %s9 = scalar_select 0, %s8, %s6
  $region1: #{tpu_custom_call.1} parent=0
    #allocation2 [shape = 'u8[8192]{0}', space=vmem, size = 0x2000, scoped, tag = 'input window, operand 0']
    #allocation3 [shape = 's32[2]{0}', space=sflag, size = 0x8, scoped, tag = 'scoped memory for tpu_custom_call.1']
    #allocation4 [shape = 's32[2]{0}', space=sflag, size = 0x8, scoped, tag = 'scoped memory for tpu_custom_call.1']
    #allocation5 [shape = 'u8[16384]{0}', space=vmem, size = 0x4000, scoped, tag = 'input window, operand 1, single buffered']
    #allocation6 [shape = 's32[1]{0}', space=sflag, size = 0x4, scoped, tag = 'scoped memory for tpu_custom_call.1']
    #allocation7 [shape = 'u8[16384]{0}', space=vmem, size = 0x4000, scoped, tag = 'input window, operand 3, single buffered']
    #allocation8 [shape = 'u8[8192]{0}', space=vmem, size = 0x2000, scoped, tag = 'output window, operand 0']
    %10 = vsyncpa [#allocation3], 0
    %s11 = scalar_lea.sflag [#allocation3], 1
    %12 = vsyncpa %s11, 0
    %13 = vsyncpa [#allocation6], 0
    %14 = vsyncpa [#allocation4], 0
    %s15 = scalar_lea.sflag [#allocation4], 1
    %16 = vsyncpa %s15, 0
    loop: start=0, step=1, limit=4
    $region2: #{tpu_custom_call.1} parent=1 // loop_pre_header
      _
    $region3: #{tpu_custom_call.1} parent=1 // loop_header
      %s18 = sphi 0, %s22
      %p19 = scmp.ge.s32.totalorder %s18, 4
      %s28 = sphi 0, %s30
      %s31 = sphi 0, %s28
      %s32 = sphi 0, %s31
      %s48 = sphi 0, %s32
      %s52 = sphi 0, %s52
      %s54 = sphi 0, %s52
      %s55 = sphi 0, %s54
      %s69 = sphi 0, %s55
      %s73 = sphi 0, %s73
      %s75 = sphi 0, %s73
      %s76 = sphi 0, %s75
      %s90 = sphi 0, %s76
      %s94 = sphi 0, %s94
      %s96 = sphi 0, %s94
      %s97 = sphi 0, %s96
      %s111 = sphi 0, %s97
      %s115 = sphi 0, %s115
      %s117 = sphi 0, %s115
      %s118 = sphi 0, %s117
      %s132 = sphi 0, %s118
      %s138 = sphi 0, %s140
      %s141 = sphi 0, %s138
      %s142 = sphi 0, %s141
      %s158 = sphi 0, %s142
    $region4: #{tpu_custom_call.1} parent=1 // loop_header_branch
      %21 = sbr.rel (%p19) target = $region8
    $region5: #{tpu_custom_call.1} parent=1 // loop_body
      %s23 = ssub.s32 %s18, 1
      %s24 = ssub.s32 %s18, 2
      %s25 = sadd.s32 %s18, 1
      %s26 = ssub.s32 %s18, %s25
      %p27 = scmp.eq.s32.totalorder %s26, 0
      %s29 = sadd.s32 %s28, 1
      %s30 = scalar_select %p27, %s28, %s29
      %p33 = pneg %p27
      %p34 = scmp.eq.s32.totalorder %s18, 1
      %p35 = por %p33, %p34
      %p36 = scmp.ne.s32.totalorder %s28, %s31
      %p37 = scmp.eq.s32.totalorder %s18, 0
      %p38 = por %p36, %p37
      %p39 = scmp.ne.s32.totalorder %s28, %s31
      %p40 = scmp.eq.s32.totalorder %s23, 1
      %p41 = por %p39, %p40
      %p42 = scmp.ne.s32.totalorder %s31, %s32
      %p43 = scmp.eq.s32.totalorder %s23, 0
      %p44 = por %p42, %p43
      %p45 = scmp.ne.s32.totalorder %s31, %s32
      %p46 = scmp.eq.s32.totalorder %s24, 1
      %p47 = por %p45, %p46
      %p49 = scmp.ne.s32.totalorder %s32, %s48
      %p50 = scmp.eq.s32.totalorder %s24, 0
      %p51 = por %p49, %p50
      %s53 = sadd.s32 %s52, 1
      %p56 = scmp.eq.s32.totalorder %s18, 1
      %p57 = scmp.ne.s32.totalorder %s52, %s54
      %p58 = scmp.eq.s32.totalorder %s18, 0
      %p59 = por %p57, %p58
      %p60 = scmp.ne.s32.totalorder %s52, %s54
      %p61 = scmp.eq.s32.totalorder %s23, 1
      %p62 = por %p60, %p61
      %p63 = scmp.ne.s32.totalorder %s54, %s55
      %p64 = scmp.eq.s32.totalorder %s23, 0
      %p65 = por %p63, %p64
      %p66 = scmp.ne.s32.totalorder %s54, %s55
      %p67 = scmp.eq.s32.totalorder %s24, 1
      %p68 = por %p66, %p67
      %p70 = scmp.ne.s32.totalorder %s55, %s69
      %p71 = scmp.eq.s32.totalorder %s24, 0
      %p72 = por %p70, %p71
      %s74 = sadd.s32 %s73, 1
      %p77 = scmp.eq.s32.totalorder %s18, 1
      %p78 = scmp.ne.s32.totalorder %s73, %s75
      %p79 = scmp.eq.s32.totalorder %s18, 0
      %p80 = por %p78, %p79
      %p81 = scmp.ne.s32.totalorder %s73, %s75
      %p82 = scmp.eq.s32.totalorder %s23, 1
      %p83 = por %p81, %p82
      %p84 = scmp.ne.s32.totalorder %s75, %s76
      %p85 = scmp.eq.s32.totalorder %s23, 0
      %p86 = por %p84, %p85
      %p87 = scmp.ne.s32.totalorder %s75, %s76
      %p88 = scmp.eq.s32.totalorder %s24, 1
      %p89 = por %p87, %p88
      %p91 = scmp.ne.s32.totalorder %s76, %s90
      %p92 = scmp.eq.s32.totalorder %s24, 0
      %p93 = por %p91, %p92
      %s95 = sadd.s32 %s94, 1
      %p98 = scmp.eq.s32.totalorder %s18, 1
      %p99 = scmp.ne.s32.totalorder %s94, %s96
      %p100 = scmp.eq.s32.totalorder %s18, 0
      %p101 = por %p99, %p100
      %p102 = scmp.ne.s32.totalorder %s94, %s96
      %p103 = scmp.eq.s32.totalorder %s23, 1
      %p104 = por %p102, %p103
      %p105 = scmp.ne.s32.totalorder %s96, %s97
      %p106 = scmp.eq.s32.totalorder %s23, 0
      %p107 = por %p105, %p106
      %p108 = scmp.ne.s32.totalorder %s96, %s97
      %p109 = scmp.eq.s32.totalorder %s24, 1
      %p110 = por %p108, %p109
      %p112 = scmp.ne.s32.totalorder %s97, %s111
      %p113 = scmp.eq.s32.totalorder %s24, 0
      %p114 = por %p112, %p113
      %s116 = sadd.s32 %s115, 1
      %p119 = scmp.eq.s32.totalorder %s18, 1
      %p120 = scmp.ne.s32.totalorder %s115, %s117
      %p121 = scmp.eq.s32.totalorder %s18, 0
      %p122 = por %p120, %p121
      %p123 = scmp.ne.s32.totalorder %s115, %s117
      %p124 = scmp.eq.s32.totalorder %s23, 1
      %p125 = por %p123, %p124
      %p126 = scmp.ne.s32.totalorder %s117, %s118
      %p127 = scmp.eq.s32.totalorder %s23, 0
      %p128 = por %p126, %p127
      %p129 = scmp.ne.s32.totalorder %s117, %s118
      %p130 = scmp.eq.s32.totalorder %s24, 1
      %p131 = por %p129, %p130
      %p133 = scmp.ne.s32.totalorder %s118, %s132
      %p134 = scmp.eq.s32.totalorder %s24, 0
      %p135 = por %p133, %p134
      %s136 = ssub.s32 %s18, %s25
      %p137 = scmp.eq.s32.totalorder %s136, 0
      %s139 = sadd.s32 %s138, 1
      %s140 = scalar_select %p137, %s138, %s139
      %p143 = pneg %p137
      %p144 = scmp.eq.s32.totalorder %s18, 1
      %p145 = por %p143, %p144
      %p146 = scmp.ne.s32.totalorder %s138, %s141
      %p147 = scmp.eq.s32.totalorder %s18, 0
      %p148 = por %p146, %p147
      %p149 = scmp.ne.s32.totalorder %s138, %s141
      %p150 = scmp.eq.s32.totalorder %s23, 1
      %p151 = por %p149, %p150
      %p152 = scmp.ne.s32.totalorder %s141, %s142
      %p153 = scmp.eq.s32.totalorder %s23, 0
      %p154 = por %p152, %p153
      %p155 = scmp.ne.s32.totalorder %s141, %s142
      %p156 = scmp.eq.s32.totalorder %s24, 1
      %p157 = por %p155, %p156
      %p159 = scmp.ne.s32.totalorder %s142, %s158
      %p160 = scmp.eq.s32.totalorder %s24, 0
      %p161 = por %p159, %p160
      %p162 = scmp.le.s32.totalorder 1, %s18
      %p163 = scmp.lt.s32.totalorder %s18, 3
      %p164 = pnand %p162, %p163
      %p165 = pneg %p164
      // Predicated region
      $region9: #{tpu_custom_call.1} parent=5 // pred_check
        _
      $region10: #{tpu_custom_call.1} parent=5 // pred_check_branch
        %167 = sbr.rel (%p164) target = $region12
      $region11: #{tpu_custom_call.1} parent=5 // pred_region
        %s168 = ssub.s32 %s18, 1
        // Predicated region
        $region13: #{tpu_custom_call.1} parent=11 // pred_check
          %p169 = pneg %p65
        $region14: #{tpu_custom_call.1} parent=11 // pred_check_branch
          %171 = sbr.rel (%p169) target = $region16
        $region15: #{tpu_custom_call.1} parent=11 // pred_region
          %173 = vsyncadd [#allocation6], 0
          %s174 = sshll.u32 %s1, 4
          %s175 = int_to_ptr.hbm [resolvable:$true] %s174
          %s176 = sshll.u32 [#allocation5], 4
          %s177 = int_to_ptr.vmem [resolvable:$true] %s176
          %182 = dma.hbm_to_vmem [thread:$0]  %s175, 512, %s177, [#allocation6], 128, 128, 8
        $region16: #{tpu_custom_call.1} parent=11 // pred_fallthru
          _
        // Predicated region
        $region17: #{tpu_custom_call.1} parent=11 // pred_check
          %p183 = pneg %p86
        $region18: #{tpu_custom_call.1} parent=11 // pred_check_branch
          %185 = sbr.rel (%p183) target = $region20
        $region19: #{tpu_custom_call.1} parent=11 // pred_region
          _
        $region20: #{tpu_custom_call.1} parent=11 // pred_fallthru
          _
        // Predicated region
        $region21: #{tpu_custom_call.1} parent=11 // pred_check
          %p186 = pneg %p107
        $region22: #{tpu_custom_call.1} parent=11 // pred_check_branch
          %188 = sbr.rel (%p186) target = $region24
        $region23: #{tpu_custom_call.1} parent=11 // pred_region
          %190 = vsyncadd [#allocation6], 0
          %s191 = sshll.u32 %s3, 4
          %s192 = int_to_ptr.hbm [resolvable:$true] %s191
          %s193 = sshll.u32 [#allocation7], 4
          %s194 = int_to_ptr.vmem [resolvable:$true] %s193
          %199 = dma.hbm_to_vmem [thread:$0]  %s192, 512, %s194, [#allocation6], 128, 128, 8
        $region24: #{tpu_custom_call.1} parent=11 // pred_fallthru
          _
        // Predicated region
        $region25: #{tpu_custom_call.1} parent=11 // pred_check
          %p200 = pneg %p128
        $region26: #{tpu_custom_call.1} parent=11 // pred_check_branch
          %202 = sbr.rel (%p200) target = $region28
        $region27: #{tpu_custom_call.1} parent=11 // pred_region
          _
        $region28: #{tpu_custom_call.1} parent=11 // pred_fallthru
          _
      $region12: #{tpu_custom_call.1} parent=5 // pred_fallthru
        _
      %p203 = scmp.lt.s32.totalorder %s18, 2
      // Predicated region
      $region29: #{tpu_custom_call.1} parent=5 // pred_check
        %p204 = pneg %p203
      $region30: #{tpu_custom_call.1} parent=5 // pred_check_branch
        %206 = sbr.rel (%p204) target = $region32
      $region31: #{tpu_custom_call.1} parent=5 // pred_region
        // Predicated region
        $region33: #{tpu_custom_call.1} parent=31 // pred_check
          %p207 = pneg %p38
        $region34: #{tpu_custom_call.1} parent=31 // pred_check_branch
          %209 = sbr.rel (%p207) target = $region36
        $region35: #{tpu_custom_call.1} parent=31 // pred_region
          %s210 = sand.u32 %s28, 1
          %s211 = scalar_lea.sflag [#allocation3], %s210
          %s212 = sand.u32 %s28, 1
          %s213 = smul.addr %s212, 8
          %s214 = scalar_lea.vmem [#allocation2], %s213
          %216 = vsyncadd %s211, 0
          %s217 = smul.addr %s18, 8
          %s218 = scalar_lea.hbm %s0, %s217
          %s220 = sshll.u32 %s218, 4
          %s221 = int_to_ptr.hbm [resolvable:$true] %s220
          %s222 = sshll.u32 %s214, 4
          %s223 = int_to_ptr.vmem [resolvable:$true] %s222
          %225 = dma.hbm_to_vmem [thread:$0]  %s221, 128, %s223, %s211
        $region36: #{tpu_custom_call.1} parent=31 // pred_fallthru
          _
      $region32: #{tpu_custom_call.1} parent=5 // pred_fallthru
        _
      %p226 = scmp.le.s32.totalorder 1, %s18
      %p227 = scmp.lt.s32.totalorder %s18, 3
      %p228 = pnand %p226, %p227
      %p229 = pneg %p228
      // Predicated region
      $region37: #{tpu_custom_call.1} parent=5 // pred_check
        _
      $region38: #{tpu_custom_call.1} parent=5 // pred_check_branch
        %231 = sbr.rel (%p228) target = $region40
      $region39: #{tpu_custom_call.1} parent=5 // pred_region
        %s232 = ssub.s32 %s18, 1
        %s233 = sand.u32 %s31, 1
        %s234 = scalar_lea.sflag [#allocation3], %s233
        %s235 = sand.u32 %s31, 1
        %s236 = smul.addr %s235, 8
        %s237 = scalar_lea.vmem [#allocation2], %s236
        // Predicated region
        $region41: #{tpu_custom_call.1} parent=39 // pred_check
          %p238 = pneg %p44
        $region42: #{tpu_custom_call.1} parent=39 // pred_check_branch
          %240 = sbr.rel (%p238) target = $region44
        $region43: #{tpu_custom_call.1} parent=39 // pred_region
          %242 = dma.done %s234, 128
        $region44: #{tpu_custom_call.1} parent=39 // pred_fallthru
          _
        // Predicated region
        $region45: #{tpu_custom_call.1} parent=39 // pred_check
          %p243 = pneg %p65
        $region46: #{tpu_custom_call.1} parent=39 // pred_check_branch
          %245 = sbr.rel (%p243) target = $region48
        $region47: #{tpu_custom_call.1} parent=39 // pred_region
          %247 = dma.done [#allocation6], 512
        $region48: #{tpu_custom_call.1} parent=39 // pred_fallthru
          _
        // Predicated region
        $region49: #{tpu_custom_call.1} parent=39 // pred_check
          %p248 = pneg %p107
        $region50: #{tpu_custom_call.1} parent=39 // pred_check_branch
          %250 = sbr.rel (%p248) target = $region52
        $region51: #{tpu_custom_call.1} parent=39 // pred_region
          %252 = dma.done [#allocation6], 512
        $region52: #{tpu_custom_call.1} parent=39 // pred_fallthru
          _
        %s253 = sand.u32 %s31, 1
        %s254 = scalar_lea.sflag [#allocation3], %s253
        %s255 = sand.u32 %s31, 1
        %s256 = smul.addr %s255, 8
        %s257 = scalar_lea.vmem [#allocation2], %s256
        %p258 = pneg %p44
        %p259 = pneg %p41
        %p260 = pneg %p65
        %p261 = pneg %p62
        %p262 = pneg %p86
        %p263 = pneg %p83
        %p264 = pneg %p107
        %p265 = pneg %p104
        %p266 = pneg %p128
        %p267 = pneg %p125
        %p268 = pneg %p154
        %p269 = pneg %p151
        %s270 = sand.u32 %s141, 1
        %s271 = scalar_lea.sflag [#allocation4], %s270
        %s272 = sand.u32 %s141, 1
        %s273 = smul.addr %s272, 8
        %s274 = scalar_lea.vmem [#allocation8], %s273
        %v275 = vld [vmem:[%s237] sm:$0xff]
        %v276 = vld [vmem:[#allocation5] sm:$0xff]
        %v277 = vld [vmem:[#allocation5 + $0x8] sm:$0xff]
        %v278 = vld [vmem:[#allocation5 + $0x10] sm:$0xff]
        %v279 = vld [vmem:[#allocation5 + $0x18] sm:$0xff]
        %v280 = vld [vmem:[%s2] sm:$0x1]
        %v282 = vperm.slane %v280, 0
        %vm284 = vcmask 261120
        %v286 = vsel %vm284, %v275, 0
        %288 = vmatpush.msra.mxu0 0.0
        %289 = vmatpush.msra.mxu0 0.0
        %290 = vmatpush.msra.mxu0 0.0
        %291 = vmatpush.msra.mxu0 0.0
        %292 = vmatpush.msra.mxu0 0.0
        %293 = vmatpush.msra.mxu0 0.0
        %294 = vmatpush.msra.mxu0 0.0
        %295 = vmatpush.msra.mxu0 0.0
        %296 = vmatpush.msra.mxu0 0.0
        %297 = vmatpush.msra.mxu0 0.0
        %298 = vmatpush.msra.mxu0 0.0
        %299 = vmatpush.msra.mxu0 0.0
        %300 = vmatpush.msra.mxu0 %v279
        %301 = vmatpush.msra.mxu0 %v278
        %302 = vmatpush.msra.mxu0 %v277
        %303 = vmatpush.msra.mxu0 %v276
        %304 = vmatmul.f32.gmra.mxu0 %v286
        %v305 = vpop.f32.mrf.mxu0
        %v306 = vadd.f32 %v282, %v305
        %307 = vdwg.mxu0
        %v308 = vmul.f32 %v306, 0.35355338
        %310 = vrot.lane.b32.xlu0 %v308, 120
        %v311 = vpop.permute.xlu0 %310
        %313 = vrot.lane.b32.xlu0 %v308, 112
        %v314 = vpop.permute.xlu0 %313
        %316 = vrot.lane.b32.xlu0 %v308, 104
        %v317 = vpop.permute.xlu0 %316
        %v319 = vrot.slane %v314, 4
        %vm320 = vcmask 1047556
        %v321 = vsel %vm320, %v319, %v308
        %v322 = vrot.slane %v308, 4
        %v323 = vsel %vm320, %v314, %v322
        %v325 = vunpack.c.l.s4 1983009808
        %v326 = vunpack.c.0.s8 %v325
        %v327 = vperm.slane %v321, %v326
        %v329 = vunpack.c.l.s4 1983009808
        %v330 = vunpack.c.0.s8 %v329
        %v331 = vperm.slane %v323, %v330
        %v332 = vrot.slane %v317, 4
        %v333 = vsel %vm320, %v332, %v311
        %v334 = vrot.slane %v311, 4
        %v335 = vsel %vm320, %v317, %v334
        %v337 = vunpack.c.l.s4 1983009808
        %v338 = vunpack.c.0.s8 %v337
        %v339 = vperm.slane %v333, %v338
        %v341 = vunpack.c.l.s4 1983009808
        %v342 = vunpack.c.0.s8 %v341
        %v343 = vperm.slane %v335, %v342
        %v344 = vrot.slane %v339, 4
        %v345 = vsel %vm320, %v344, %v327
        %v346 = vrot.slane %v327, 4
        %v347 = vsel %vm320, %v339, %v346
        %v349 = vunpack.c.l.s4 1934713408
        %v350 = vunpack.c.0.s8 %v349
        %v351 = vperm.slane %v345, %v350
        %v353 = vunpack.c.l.s4 1934713408
        %v354 = vunpack.c.0.s8 %v353
        %v355 = vperm.slane %v347, %v354
        %v356 = vrot.slane %v343, 4
        %v357 = vsel %vm320, %v356, %v331
        %v358 = vrot.slane %v331, 4
        %v359 = vsel %vm320, %v343, %v358
        %v361 = vunpack.c.l.s4 1934713408
        %v362 = vunpack.c.0.s8 %v361
        %v363 = vperm.slane %v357, %v362
        %v365 = vunpack.c.l.s4 1934713408
        %v366 = vunpack.c.0.s8 %v365
        %v367 = vperm.slane %v359, %v366
        %v368 = vrot.slane %v351, 4
        %v369 = vsel %vm320, 0.0, %v368
        %v370 = vrot.slane %v355, 4
        %v371 = vsel %vm320, 0.0, %v370
        %v372 = vrot.slane %v363, 4
        %v373 = vsel %vm320, 0.0, %v372
        %v374 = vrot.slane %v367, 4
        %v375 = vsel %vm320, 0.0, %v374
        %v376 = vsel %vm320, %v370, %v351
        %v378 = vunpack.c.l.s4 1983009808
        %v379 = vunpack.c.0.s8 %v378
        %v380 = vperm.slane %v376, %v379
        %v381 = vrot.slane %v371, 4
        %v382 = vsel %vm320, %v381, %v369
        %v384 = vunpack.c.l.s4 1983009808
        %v385 = vunpack.c.0.s8 %v384
        %v386 = vperm.slane %v382, %v385
        %v387 = vsel %vm320, %v374, %v363
        %v389 = vunpack.c.l.s4 1983009808
        %v390 = vunpack.c.0.s8 %v389
        %v391 = vperm.slane %v387, %v390
        %v392 = vrot.slane %v375, 4
        %v393 = vsel %vm320, %v392, %v373
        %v395 = vunpack.c.l.s4 1983009808
        %v396 = vunpack.c.0.s8 %v395
        %v397 = vperm.slane %v393, %v396
        %v398 = vrot.slane %v386, 4
        %v399 = vsel %vm320, %v398, %v380
        %v400 = vrot.slane %v380, 4
        %v401 = vsel %vm320, %v386, %v400
        %v403 = vunpack.c.l.s4 1934713408
        %v404 = vunpack.c.0.s8 %v403
        %v405 = vperm.slane %v399, %v404
        %v407 = vunpack.c.l.s4 1934713408
        %v408 = vunpack.c.0.s8 %v407
        %v409 = vperm.slane %v401, %v408
        %v410 = vrot.slane %v397, 4
        %v411 = vsel %vm320, %v410, %v391
        %v412 = vrot.slane %v391, 4
        %v413 = vsel %vm320, %v397, %v412
        %v415 = vunpack.c.l.s4 1934713408
        %v416 = vunpack.c.0.s8 %v415
        %v417 = vperm.slane %v411, %v416
        %v419 = vunpack.c.l.s4 1934713408
        %v420 = vunpack.c.0.s8 %v419
        %v421 = vperm.slane %v413, %v420
        %v422 = vrot.slane %v417, 4
        %v423 = vsel %vm320, %v422, %v405
        %v424 = vrot.slane %v405, 4
        %v425 = vsel %vm320, %v417, %v424
        %v426 = vrot.slane %v421, 4
        %v427 = vsel %vm320, %v426, %v409
        %v428 = vrot.slane %v409, 4
        %v429 = vsel %vm320, %v421, %v428
        %431 = vrot.lane.b32.xlu0 %v306, 120
        %v432 = vpop.permute.xlu0 %431
        %433 = vrot.lane.b32.xlu0 %v306, 112
        %v434 = vpop.permute.xlu0 %433
        %435 = vrot.lane.b32.xlu0 %v306, 104
        %v436 = vpop.permute.xlu0 %435
        %437 = vrot.lane.b32.xlu0 %v306, 96
        %v438 = vpop.permute.xlu0 %437
        %439 = vrot.lane.b32.xlu0 %v432, 96
        %v440 = vpop.permute.xlu0 %439
        %441 = vrot.lane.b32.xlu0 %v434, 96
        %v442 = vpop.permute.xlu0 %441
        %443 = vrot.lane.b32.xlu0 %v436, 96
        %v444 = vpop.permute.xlu0 %443
        %v449 = vrot.slane %v442, 4
        %v450 = vsel %vm320, %v449, %v438
        %v451 = vrot.slane %v438, 4
        %v452 = vsel %vm320, %v442, %v451
        %v454 = vunpack.c.l.s4 1983009808
        %v455 = vunpack.c.0.s8 %v454
        %v456 = vperm.slane %v450, %v455
        %v458 = vunpack.c.l.s4 1983009808
        %v459 = vunpack.c.0.s8 %v458
        %v460 = vperm.slane %v452, %v459
        %v461 = vrot.slane %v444, 4
        %v462 = vsel %vm320, %v461, %v440
        %v463 = vrot.slane %v440, 4
        %v464 = vsel %vm320, %v444, %v463
        %v466 = vunpack.c.l.s4 1983009808
        %v467 = vunpack.c.0.s8 %v466
        %v468 = vperm.slane %v462, %v467
        %v470 = vunpack.c.l.s4 1983009808
        %v471 = vunpack.c.0.s8 %v470
        %v472 = vperm.slane %v464, %v471
        %v473 = vrot.slane %v468, 4
        %v474 = vsel %vm320, %v473, %v456
        %v475 = vrot.slane %v456, 4
        %v476 = vsel %vm320, %v468, %v475
        %v478 = vunpack.c.l.s4 1934713408
        %v479 = vunpack.c.0.s8 %v478
        %v480 = vperm.slane %v474, %v479
        %v482 = vunpack.c.l.s4 1934713408
        %v483 = vunpack.c.0.s8 %v482
        %v484 = vperm.slane %v476, %v483
        %v485 = vrot.slane %v472, 4
        %v486 = vsel %vm320, %v485, %v460
        %v487 = vrot.slane %v460, 4
        %v488 = vsel %vm320, %v472, %v487
        %v490 = vunpack.c.l.s4 1934713408
        %v491 = vunpack.c.0.s8 %v490
        %v492 = vperm.slane %v486, %v491
        %v494 = vunpack.c.l.s4 1934713408
        %v495 = vunpack.c.0.s8 %v494
        %v496 = vperm.slane %v488, %v495
        %v497 = vrot.slane %v480, 4
        %v498 = vsel %vm320, 0.0, %v497
        %v499 = vrot.slane %v484, 4
        %v500 = vsel %vm320, 0.0, %v499
        %v501 = vrot.slane %v492, 4
        %v502 = vsel %vm320, 0.0, %v501
        %v503 = vrot.slane %v496, 4
        %v504 = vsel %vm320, 0.0, %v503
        %v505 = vsel %vm320, %v499, %v480
        %v507 = vunpack.c.l.s4 1983009808
        %v508 = vunpack.c.0.s8 %v507
        %v509 = vperm.slane %v505, %v508
        %v510 = vrot.slane %v500, 4
        %v511 = vsel %vm320, %v510, %v498
        %v513 = vunpack.c.l.s4 1983009808
        %v514 = vunpack.c.0.s8 %v513
        %v515 = vperm.slane %v511, %v514
        %v516 = vsel %vm320, %v503, %v492
        %v518 = vunpack.c.l.s4 1983009808
        %v519 = vunpack.c.0.s8 %v518
        %v520 = vperm.slane %v516, %v519
        %v521 = vrot.slane %v504, 4
        %v522 = vsel %vm320, %v521, %v502
        %v524 = vunpack.c.l.s4 1983009808
        %v525 = vunpack.c.0.s8 %v524
        %v526 = vperm.slane %v522, %v525
        %v527 = vrot.slane %v515, 4
        %v528 = vsel %vm320, %v527, %v509
        %v529 = vrot.slane %v509, 4
        %v530 = vsel %vm320, %v515, %v529
        %v532 = vunpack.c.l.s4 1934713408
        %v533 = vunpack.c.0.s8 %v532
        %v534 = vperm.slane %v528, %v533
        %v536 = vunpack.c.l.s4 1934713408
        %v537 = vunpack.c.0.s8 %v536
        %v538 = vperm.slane %v530, %v537
        %v539 = vrot.slane %v526, 4
        %v540 = vsel %vm320, %v539, %v520
        %v541 = vrot.slane %v520, 4
        %v542 = vsel %vm320, %v526, %v541
        %v544 = vunpack.c.l.s4 1934713408
        %v545 = vunpack.c.0.s8 %v544
        %v546 = vperm.slane %v540, %v545
        %v548 = vunpack.c.l.s4 1934713408
        %v549 = vunpack.c.0.s8 %v548
        %v550 = vperm.slane %v542, %v549
        %v551 = vrot.slane %v546, 4
        %v552 = vsel %vm320, %v551, %v534
        %v553 = vrot.slane %v534, 4
        %v554 = vsel %vm320, %v546, %v553
        %v555 = vrot.slane %v550, 4
        %v556 = vsel %vm320, %v555, %v538
        %v557 = vrot.slane %v538, 4
        %v558 = vsel %vm320, %v550, %v557
        %559 = vrot.lane.b32.xlu0 %v306, 64
        %v560 = vpop.permute.xlu0 %559
        %561 = vrot.lane.b32.xlu0 %v432, 64
        %v562 = vpop.permute.xlu0 %561
        %563 = vrot.lane.b32.xlu0 %v434, 64
        %v564 = vpop.permute.xlu0 %563
        %565 = vrot.lane.b32.xlu0 %v436, 64
        %v566 = vpop.permute.xlu0 %565
        %v571 = vrot.slane %v564, 4
        %v572 = vsel %vm320, %v571, %v560
        %v573 = vrot.slane %v560, 4
        %v574 = vsel %vm320, %v564, %v573
        %v576 = vunpack.c.l.s4 1983009808
        %v577 = vunpack.c.0.s8 %v576
        %v578 = vperm.slane %v572, %v577
        %v580 = vunpack.c.l.s4 1983009808
        %v581 = vunpack.c.0.s8 %v580
        %v582 = vperm.slane %v574, %v581
        %v583 = vrot.slane %v566, 4
        %v584 = vsel %vm320, %v583, %v562
        %v585 = vrot.slane %v562, 4
        %v586 = vsel %vm320, %v566, %v585
        %v588 = vunpack.c.l.s4 1983009808
        %v589 = vunpack.c.0.s8 %v588
        %v590 = vperm.slane %v584, %v589
        %v592 = vunpack.c.l.s4 1983009808
        %v593 = vunpack.c.0.s8 %v592
        %v594 = vperm.slane %v586, %v593
        %v595 = vrot.slane %v590, 4
        %v596 = vsel %vm320, %v595, %v578
        %v597 = vrot.slane %v578, 4
        %v598 = vsel %vm320, %v590, %v597
        %v600 = vunpack.c.l.s4 1934713408
        %v601 = vunpack.c.0.s8 %v600
        %v602 = vperm.slane %v596, %v601
        %v604 = vunpack.c.l.s4 1934713408
        %v605 = vunpack.c.0.s8 %v604
        %v606 = vperm.slane %v598, %v605
        %v607 = vrot.slane %v594, 4
        %v608 = vsel %vm320, %v607, %v582
        %v609 = vrot.slane %v582, 4
        %v610 = vsel %vm320, %v594, %v609
        %v612 = vunpack.c.l.s4 1934713408
        %v613 = vunpack.c.0.s8 %v612
        %v614 = vperm.slane %v608, %v613
        %v616 = vunpack.c.l.s4 1934713408
        %v617 = vunpack.c.0.s8 %v616
        %v618 = vperm.slane %v610, %v617
        %v619 = vrot.slane %v602, 4
        %v620 = vsel %vm320, 0.0, %v619
        %v621 = vrot.slane %v606, 4
        %v622 = vsel %vm320, 0.0, %v621
        %v623 = vrot.slane %v614, 4
        %v624 = vsel %vm320, 0.0, %v623
        %v625 = vrot.slane %v618, 4
        %v626 = vsel %vm320, 0.0, %v625
        %v627 = vsel %vm320, %v621, %v602
        %v629 = vunpack.c.l.s4 1983009808
        %v630 = vunpack.c.0.s8 %v629
        %v631 = vperm.slane %v627, %v630
        %v632 = vrot.slane %v622, 4
        %v633 = vsel %vm320, %v632, %v620
        %v635 = vunpack.c.l.s4 1983009808
        %v636 = vunpack.c.0.s8 %v635
        %v637 = vperm.slane %v633, %v636
        %v638 = vsel %vm320, %v625, %v614
        %v640 = vunpack.c.l.s4 1983009808
        %v641 = vunpack.c.0.s8 %v640
        %v642 = vperm.slane %v638, %v641
        %v643 = vrot.slane %v626, 4
        %v644 = vsel %vm320, %v643, %v624
        %v646 = vunpack.c.l.s4 1983009808
        %v647 = vunpack.c.0.s8 %v646
        %v648 = vperm.slane %v644, %v647
        %v649 = vrot.slane %v637, 4
        %v650 = vsel %vm320, %v649, %v631
        %v651 = vrot.slane %v631, 4
        %v652 = vsel %vm320, %v637, %v651
        %v654 = vunpack.c.l.s4 1934713408
        %v655 = vunpack.c.0.s8 %v654
        %v656 = vperm.slane %v650, %v655
        %v658 = vunpack.c.l.s4 1934713408
        %v659 = vunpack.c.0.s8 %v658
        %v660 = vperm.slane %v652, %v659
        %v661 = vrot.slane %v648, 4
        %v662 = vsel %vm320, %v661, %v642
        %v663 = vrot.slane %v642, 4
        %v664 = vsel %vm320, %v648, %v663
        %v666 = vunpack.c.l.s4 1934713408
        %v667 = vunpack.c.0.s8 %v666
        %v668 = vperm.slane %v662, %v667
        %v670 = vunpack.c.l.s4 1934713408
        %v671 = vunpack.c.0.s8 %v670
        %v672 = vperm.slane %v664, %v671
        %v673 = vrot.slane %v668, 4
        %v674 = vsel %vm320, %v673, %v656
        %v675 = vrot.slane %v656, 4
        %v676 = vsel %vm320, %v668, %v675
        %v677 = vrot.slane %v672, 4
        %v678 = vsel %vm320, %v677, %v660
        %v679 = vrot.slane %v660, 4
        %v680 = vsel %vm320, %v672, %v679
        %vm681 = vcmask 64512
        %v683 = vsel %vm681, %v423, 0
        %v686 = vsel %vm681, %v552, 0
        %688 = vmatpush.xpose.msra.mxu0 0.0
        %689 = vmatpush.xpose.msra.mxu0 0.0
        %690 = vmatpush.xpose.msra.mxu0 0.0
        %691 = vmatpush.xpose.msra.mxu0 0.0
        %692 = vmatpush.xpose.msra.mxu0 0.0
        %693 = vmatpush.xpose.msra.mxu0 0.0
        %694 = vmatpush.xpose.msra.mxu0 0.0
        %695 = vmatpush.xpose.msra.mxu0 0.0
        %696 = vmatpush.xpose.msra.mxu0 0.0
        %697 = vmatpush.xpose.msra.mxu0 0.0
        %698 = vmatpush.xpose.msra.mxu0 0.0
        %699 = vmatpush.xpose.msra.mxu0 0.0
        %700 = vmatpush.xpose.msra.mxu0 0.0
        %701 = vmatpush.xpose.msra.mxu0 0.0
        %702 = vmatpush.xpose.msra.mxu0 0.0
        %703 = vmatpush.xpose.msra.mxu0 %v686
        %704 = vmatmul.f32.gmra.mxu0 %v683
        %v705 = vpop.f32.mrf.mxu0
        %v706 = vadd.f32 0.0, %v705
        %707 = vdwg.mxu0
        %v709 = vsel %vm681, %v425, 0
        %v712 = vsel %vm681, %v554, 0
        %714 = vmatpush.xpose.msra.mxu0 0.0
        %715 = vmatpush.xpose.msra.mxu0 0.0
        %716 = vmatpush.xpose.msra.mxu0 0.0
        %717 = vmatpush.xpose.msra.mxu0 0.0
        %718 = vmatpush.xpose.msra.mxu0 0.0
        %719 = vmatpush.xpose.msra.mxu0 0.0
        %720 = vmatpush.xpose.msra.mxu0 0.0
        %721 = vmatpush.xpose.msra.mxu0 0.0
        %722 = vmatpush.xpose.msra.mxu0 0.0
        %723 = vmatpush.xpose.msra.mxu0 0.0
        %724 = vmatpush.xpose.msra.mxu0 0.0
        %725 = vmatpush.xpose.msra.mxu0 0.0
        %726 = vmatpush.xpose.msra.mxu0 0.0
        %727 = vmatpush.xpose.msra.mxu0 0.0
        %728 = vmatpush.xpose.msra.mxu0 0.0
        %729 = vmatpush.xpose.msra.mxu0 %v712
        %730 = vmatmul.f32.gmra.mxu0 %v709
        %v731 = vpop.f32.mrf.mxu0
        %v732 = vadd.f32 0.0, %v731
        %733 = vdwg.mxu0
        %v735 = vsel %vm681, %v427, 0
        %v738 = vsel %vm681, %v556, 0
        %740 = vmatpush.xpose.msra.mxu0 0.0
        %741 = vmatpush.xpose.msra.mxu0 0.0
        %742 = vmatpush.xpose.msra.mxu0 0.0
        %743 = vmatpush.xpose.msra.mxu0 0.0
        %744 = vmatpush.xpose.msra.mxu0 0.0
        %745 = vmatpush.xpose.msra.mxu0 0.0
        %746 = vmatpush.xpose.msra.mxu0 0.0
        %747 = vmatpush.xpose.msra.mxu0 0.0
        %748 = vmatpush.xpose.msra.mxu0 0.0
        %749 = vmatpush.xpose.msra.mxu0 0.0
        %750 = vmatpush.xpose.msra.mxu0 0.0
        %751 = vmatpush.xpose.msra.mxu0 0.0
        %752 = vmatpush.xpose.msra.mxu0 0.0
        %753 = vmatpush.xpose.msra.mxu0 0.0
        %754 = vmatpush.xpose.msra.mxu0 0.0
        %755 = vmatpush.xpose.msra.mxu0 %v738
        %756 = vmatmul.f32.gmra.mxu0 %v735
        %v757 = vpop.f32.mrf.mxu0
        %v758 = vadd.f32 0.0, %v757
        %759 = vdwg.mxu0
        %v761 = vsel %vm681, %v429, 0
        %v764 = vsel %vm681, %v558, 0
        %766 = vmatpush.xpose.msra.mxu0 0.0
        %767 = vmatpush.xpose.msra.mxu0 0.0
        %768 = vmatpush.xpose.msra.mxu0 0.0
        %769 = vmatpush.xpose.msra.mxu0 0.0
        %770 = vmatpush.xpose.msra.mxu0 0.0
        %771 = vmatpush.xpose.msra.mxu0 0.0
        %772 = vmatpush.xpose.msra.mxu0 0.0
        %773 = vmatpush.xpose.msra.mxu0 0.0
        %774 = vmatpush.xpose.msra.mxu0 0.0
        %775 = vmatpush.xpose.msra.mxu0 0.0
        %776 = vmatpush.xpose.msra.mxu0 0.0
        %777 = vmatpush.xpose.msra.mxu0 0.0
        %778 = vmatpush.xpose.msra.mxu0 0.0
        %779 = vmatpush.xpose.msra.mxu0 0.0
        %780 = vmatpush.xpose.msra.mxu0 0.0
        %781 = vmatpush.xpose.msra.mxu0 %v764
        %782 = vmatmul.f32.gmra.mxu0 %v761
        %v783 = vpop.f32.mrf.mxu0
        %v784 = vadd.f32 0.0, %v783
        %785 = vdwg.mxu0
        %v786 = vsel %vm681, %v706, -inf
        %787 = vmax.xlane.f32.xlu0 %v786
        %v788 = vpop.xlane.xlu0 %787
        %v789 = vsel %vm681, %v732, -inf
        %790 = vmax.xlane.f32.xlu0 %v789
        %v791 = vpop.xlane.xlu0 %790
        %v792 = vsel %vm681, %v758, -inf
        %793 = vmax.xlane.f32.xlu0 %v792
        %v794 = vpop.xlane.xlu0 %793
        %v795 = vsel %vm681, %v784, -inf
        %796 = vmax.xlane.f32.xlu0 %v795
        %v797 = vpop.xlane.xlu0 %796
        %v798 = vsub.f32 %v706, %v788
        %v799 = vsub.f32 %v732, %v791
        %v800 = vsub.f32 %v758, %v794
        %v801 = vsub.f32 %v784, %v797
        %v802 = vmul.f32 %v798, 1.442695
        %v803 = vpow.pop %v802
        %v804 = vmul.f32 %v799, 1.442695
        %v805 = vpow.pop %v804
        %v806 = vmul.f32 %v800, 1.442695
        %v807 = vpow.pop %v806
        %v808 = vmul.f32 %v801, 1.442695
        %v809 = vpow.pop %v808
        %v810 = vsel %vm681, %v803, 0.0
        %811 = vadd.xlane.f32.xlu0 %v810
        %v812 = vpop.xlane.xlu0 %811
        %v813 = vsel %vm681, %v805, 0.0
        %814 = vadd.xlane.f32.xlu0 %v813
        %v815 = vpop.xlane.xlu0 %814
        %v816 = vsel %vm681, %v807, 0.0
        %817 = vadd.xlane.f32.xlu0 %v816
        %v818 = vpop.xlane.xlu0 %817
        %v819 = vsel %vm681, %v809, 0.0
        %820 = vadd.xlane.f32.xlu0 %v819
        %v821 = vpop.xlane.xlu0 %820
        %v823 = vsel %vm681, %v803, 0
        %825 = vmatpush.msra.mxu0 0.0
        %826 = vmatpush.msra.mxu0 0.0
        %827 = vmatpush.msra.mxu0 0.0
        %828 = vmatpush.msra.mxu0 0.0
        %829 = vmatpush.msra.mxu0 0.0
        %830 = vmatpush.msra.mxu0 0.0
        %831 = vmatpush.msra.mxu0 0.0
        %832 = vmatpush.msra.mxu0 0.0
        %833 = vmatpush.msra.mxu0 0.0
        %834 = vmatpush.msra.mxu0 0.0
        %835 = vmatpush.msra.mxu0 0.0
        %836 = vmatpush.msra.mxu0 0.0
        %837 = vmatpush.msra.mxu0 0.0
        %838 = vmatpush.msra.mxu0 0.0
        %839 = vmatpush.msra.mxu0 0.0
        %840 = vmatpush.msra.mxu0 %v674
        %841 = vmatmul.f32.gmra.mxu0 %v823
        %v842 = vpop.f32.mrf.mxu0
        %v843 = vadd.f32 0.0, %v842
        %844 = vdwg.mxu0
        %v846 = vsel %vm681, %v805, 0
        %848 = vmatpush.msra.mxu0 0.0
        %849 = vmatpush.msra.mxu0 0.0
        %850 = vmatpush.msra.mxu0 0.0
        %851 = vmatpush.msra.mxu0 0.0
        %852 = vmatpush.msra.mxu0 0.0
        %853 = vmatpush.msra.mxu0 0.0
        %854 = vmatpush.msra.mxu0 0.0
        %855 = vmatpush.msra.mxu0 0.0
        %856 = vmatpush.msra.mxu0 0.0
        %857 = vmatpush.msra.mxu0 0.0
        %858 = vmatpush.msra.mxu0 0.0
        %859 = vmatpush.msra.mxu0 0.0
        %860 = vmatpush.msra.mxu0 0.0
        %861 = vmatpush.msra.mxu0 0.0
        %862 = vmatpush.msra.mxu0 0.0
        %863 = vmatpush.msra.mxu0 %v676
        %864 = vmatmul.f32.gmra.mxu0 %v846
        %v865 = vpop.f32.mrf.mxu0
        %v866 = vadd.f32 0.0, %v865
        %867 = vdwg.mxu0
        %v869 = vsel %vm681, %v807, 0
        %871 = vmatpush.msra.mxu0 0.0
        %872 = vmatpush.msra.mxu0 0.0
        %873 = vmatpush.msra.mxu0 0.0
        %874 = vmatpush.msra.mxu0 0.0
        %875 = vmatpush.msra.mxu0 0.0
        %876 = vmatpush.msra.mxu0 0.0
        %877 = vmatpush.msra.mxu0 0.0
        %878 = vmatpush.msra.mxu0 0.0
        %879 = vmatpush.msra.mxu0 0.0
        %880 = vmatpush.msra.mxu0 0.0
        %881 = vmatpush.msra.mxu0 0.0
        %882 = vmatpush.msra.mxu0 0.0
        %883 = vmatpush.msra.mxu0 0.0
        %884 = vmatpush.msra.mxu0 0.0
        %885 = vmatpush.msra.mxu0 0.0
        %886 = vmatpush.msra.mxu0 %v678
        %887 = vmatmul.f32.gmra.mxu0 %v869
        %v888 = vpop.f32.mrf.mxu0
        %v889 = vadd.f32 0.0, %v888
        %890 = vdwg.mxu0
        %v892 = vsel %vm681, %v809, 0
        %894 = vmatpush.msra.mxu0 0.0
        %895 = vmatpush.msra.mxu0 0.0
        %896 = vmatpush.msra.mxu0 0.0
        %897 = vmatpush.msra.mxu0 0.0
        %898 = vmatpush.msra.mxu0 0.0
        %899 = vmatpush.msra.mxu0 0.0
        %900 = vmatpush.msra.mxu0 0.0
        %901 = vmatpush.msra.mxu0 0.0
        %902 = vmatpush.msra.mxu0 0.0
        %903 = vmatpush.msra.mxu0 0.0
        %904 = vmatpush.msra.mxu0 0.0
        %905 = vmatpush.msra.mxu0 0.0
        %906 = vmatpush.msra.mxu0 0.0
        %907 = vmatpush.msra.mxu0 0.0
        %908 = vmatpush.msra.mxu0 0.0
        %909 = vmatpush.msra.mxu0 %v680
        %910 = vmatmul.f32.gmra.mxu0 %v892
        %v911 = vpop.f32.mrf.mxu0
        %v912 = vadd.f32 0.0, %v911
        %913 = vdwg.mxu0
        %v914 = vrcp.pop %v812
        %v915 = vmul.f32 %v812, %v914
        %v916 = vsub.f32 1.0, %v915
        %v917 = vmul.f32 %v914, %v916
        %v918 = vadd.f32 %v914, %v917
        %vm919 = vweird.f32 %v812
        %vm920 = vweird.f32 %v914
        %vm921 = vmor %vm919, %vm920
        %v922 = vsel %vm921, %v914, %v918
        %v923 = vand.u32 2147483647, %v812
        %vm924 = vcmp.eq.f32.partialorder %v923, 8.507059e+37
        %v925 = vand.u32 %v812, 2147483648
        %v926 = vor.u32 1.1754944e-38, %v925
        %v927 = vsel %vm924, %v926, %v922
        %v928 = vrcp.pop %v815
        %v929 = vmul.f32 %v815, %v928
        %v930 = vsub.f32 1.0, %v929
        %v931 = vmul.f32 %v928, %v930
        %v932 = vadd.f32 %v928, %v931
        %vm933 = vweird.f32 %v815
        %vm934 = vweird.f32 %v928
        %vm935 = vmor %vm933, %vm934
        %v936 = vsel %vm935, %v928, %v932
        %v937 = vand.u32 2147483647, %v815
        %vm938 = vcmp.eq.f32.partialorder %v937, 8.507059e+37
        %v939 = vand.u32 %v815, 2147483648
        %v940 = vor.u32 1.1754944e-38, %v939
        %v941 = vsel %vm938, %v940, %v936
        %v942 = vrcp.pop %v818
        %v943 = vmul.f32 %v818, %v942
        %v944 = vsub.f32 1.0, %v943
        %v945 = vmul.f32 %v942, %v944
        %v946 = vadd.f32 %v942, %v945
        %vm947 = vweird.f32 %v818
        %vm948 = vweird.f32 %v942
        %vm949 = vmor %vm947, %vm948
        %v950 = vsel %vm949, %v942, %v946
        %v951 = vand.u32 2147483647, %v818
        %vm952 = vcmp.eq.f32.partialorder %v951, 8.507059e+37
        %v953 = vand.u32 %v818, 2147483648
        %v954 = vor.u32 1.1754944e-38, %v953
        %v955 = vsel %vm952, %v954, %v950
        %v956 = vrcp.pop %v821
        %v957 = vmul.f32 %v821, %v956
        %v958 = vsub.f32 1.0, %v957
        %v959 = vmul.f32 %v956, %v958
        %v960 = vadd.f32 %v956, %v959
        %vm961 = vweird.f32 %v821
        %vm962 = vweird.f32 %v956
        %vm963 = vmor %vm961, %vm962
        %v964 = vsel %vm963, %v956, %v960
        %v965 = vand.u32 2147483647, %v821
        %vm966 = vcmp.eq.f32.partialorder %v965, 8.507059e+37
        %v967 = vand.u32 %v821, 2147483648
        %v968 = vor.u32 1.1754944e-38, %v967
        %v969 = vsel %vm966, %v968, %v964
        %v970 = vmul.f32 %v843, %v927
        %v971 = vmul.f32 %v866, %v941
        %v972 = vmul.f32 %v889, %v955
        %v973 = vmul.f32 %v912, %v969
        %v974 = vrot.slane %v972, 4
        %v975 = vsel %vm320, %v974, %v970
        %v976 = vrot.slane %v970, 4
        %v977 = vsel %vm320, %v972, %v976
        %v979 = vunpack.c.l.s4 1983009808
        %v980 = vunpack.c.0.s8 %v979
        %v981 = vperm.slane %v975, %v980
        %v983 = vunpack.c.l.s4 1983009808
        %v984 = vunpack.c.0.s8 %v983
        %v985 = vperm.slane %v977, %v984
        %v986 = vrot.slane %v973, 4
        %v987 = vsel %vm320, %v986, %v971
        %v988 = vrot.slane %v971, 4
        %v989 = vsel %vm320, %v973, %v988
        %v991 = vunpack.c.l.s4 1983009808
        %v992 = vunpack.c.0.s8 %v991
        %v993 = vperm.slane %v987, %v992
        %v995 = vunpack.c.l.s4 1983009808
        %v996 = vunpack.c.0.s8 %v995
        %v997 = vperm.slane %v989, %v996
        %v998 = vrot.slane %v993, 4
        %v999 = vsel %vm320, %v998, %v981
        %v1000 = vrot.slane %v981, 4
        %v1001 = vsel %vm320, %v993, %v1000
        %v1003 = vunpack.c.l.s4 1934713408
        %v1004 = vunpack.c.0.s8 %v1003
        %v1005 = vperm.slane %v999, %v1004
        %v1007 = vunpack.c.l.s4 1934713408
        %v1008 = vunpack.c.0.s8 %v1007
        %v1009 = vperm.slane %v1001, %v1008
        %v1010 = vrot.slane %v997, 4
        %v1011 = vsel %vm320, %v1010, %v985
        %v1012 = vrot.slane %v985, 4
        %v1013 = vsel %vm320, %v997, %v1012
        %v1015 = vunpack.c.l.s4 1934713408
        %v1016 = vunpack.c.0.s8 %v1015
        %v1017 = vperm.slane %v1011, %v1016
        %v1019 = vunpack.c.l.s4 1934713408
        %v1020 = vunpack.c.0.s8 %v1019
        %v1021 = vperm.slane %v1013, %v1020
        %v1022 = vrot.slane %v1005, 4
        %v1023 = vsel %vm320, 0.0, %v1022
        %v1024 = vrot.slane %v1009, 4
        %v1025 = vsel %vm320, 0.0, %v1024
        %v1026 = vrot.slane %v1017, 4
        %v1027 = vsel %vm320, 0.0, %v1026
        %v1028 = vrot.slane %v1021, 4
        %v1029 = vsel %vm320, 0.0, %v1028
        %v1030 = vsel %vm320, %v1024, %v1005
        %v1032 = vunpack.c.l.s4 1983009808
        %v1033 = vunpack.c.0.s8 %v1032
        %v1034 = vperm.slane %v1030, %v1033
        %v1035 = vrot.slane %v1025, 4
        %v1036 = vsel %vm320, %v1035, %v1023
        %v1038 = vunpack.c.l.s4 1983009808
        %v1039 = vunpack.c.0.s8 %v1038
        %v1040 = vperm.slane %v1036, %v1039
        %v1041 = vsel %vm320, %v1028, %v1017
        %v1043 = vunpack.c.l.s4 1983009808
        %v1044 = vunpack.c.0.s8 %v1043
        %v1045 = vperm.slane %v1041, %v1044
        %v1046 = vrot.slane %v1029, 4
        %v1047 = vsel %vm320, %v1046, %v1027
        %v1049 = vunpack.c.l.s4 1983009808
        %v1050 = vunpack.c.0.s8 %v1049
        %v1051 = vperm.slane %v1047, %v1050
        %v1052 = vrot.slane %v1040, 4
        %v1053 = vsel %vm320, %v1052, %v1034
        %v1054 = vrot.slane %v1034, 4
        %v1055 = vsel %vm320, %v1040, %v1054
        %v1057 = vunpack.c.l.s4 1934713408
        %v1058 = vunpack.c.0.s8 %v1057
        %v1059 = vperm.slane %v1053, %v1058
        %v1061 = vunpack.c.l.s4 1934713408
        %v1062 = vunpack.c.0.s8 %v1061
        %v1063 = vperm.slane %v1055, %v1062
        %v1064 = vrot.slane %v1051, 4
        %v1065 = vsel %vm320, %v1064, %v1045
        %v1066 = vrot.slane %v1045, 4
        %v1067 = vsel %vm320, %v1051, %v1066
        %v1069 = vunpack.c.l.s4 1934713408
        %v1070 = vunpack.c.0.s8 %v1069
        %v1071 = vperm.slane %v1065, %v1070
        %v1073 = vunpack.c.l.s4 1934713408
        %v1074 = vunpack.c.0.s8 %v1073
        %v1075 = vperm.slane %v1067, %v1074
        %v1076 = vrot.slane %v1071, 4
        %v1077 = vsel %vm320, %v1076, %v1059
        %v1078 = vrot.slane %v1059, 4
        %v1079 = vsel %vm320, %v1071, %v1078
        %v1080 = vrot.slane %v1075, 4
        %v1081 = vsel %vm320, %v1080, %v1063
        %v1082 = vrot.slane %v1063, 4
        %v1083 = vsel %vm320, %v1075, %v1082
        %1085 = vrot.lane.b32.xlu0 %v1079, 8
        %v1086 = vpop.permute.xlu0 %1085
        %1089 = vrot.lane.b32.xlu0 %v1081, 16
        %v1090 = vpop.permute.xlu0 %1089
        %1093 = vrot.lane.b32.xlu0 %v1083, 24
        %v1094 = vpop.permute.xlu0 %1093
        %v1096 = vsel %vm681, %v1077, %v1086
        %vm1097 = vcmask 130048
        %v1098 = vsel %vm1097, %v1096, %v1090
        %vm1099 = vcmask 195584
        %v1100 = vsel %vm1099, %v1098, %v1094
        %v1101 = vld [vmem:[#allocation7] sm:$0xff]
        %v1102 = vld [vmem:[#allocation7 + $0x8] sm:$0xff]
        %v1103 = vld [vmem:[#allocation7 + $0x10] sm:$0xff]
        %v1104 = vld [vmem:[#allocation7 + $0x18] sm:$0xff]
        %v1105 = vld [vmem:[%s4] sm:$0x1]
        %v1107 = vperm.slane %v1105, 0
        %v1110 = vsel %vm284, %v1100, 0
        %1112 = vmatpush.msra.mxu0 0.0
        %1113 = vmatpush.msra.mxu0 0.0
        %1114 = vmatpush.msra.mxu0 0.0
        %1115 = vmatpush.msra.mxu0 0.0
        %1116 = vmatpush.msra.mxu0 0.0
        %1117 = vmatpush.msra.mxu0 0.0
        %1118 = vmatpush.msra.mxu0 0.0
        %1119 = vmatpush.msra.mxu0 0.0
        %1120 = vmatpush.msra.mxu0 0.0
        %1121 = vmatpush.msra.mxu0 0.0
        %1122 = vmatpush.msra.mxu0 0.0
        %1123 = vmatpush.msra.mxu0 0.0
        %1124 = vmatpush.msra.mxu0 %v1104
        %1125 = vmatpush.msra.mxu0 %v1103
        %1126 = vmatpush.msra.mxu0 %v1102
        %1127 = vmatpush.msra.mxu0 %v1101
        %1128 = vmatmul.f32.gmra.mxu0 %v1110
        %v1129 = vpop.f32.mrf.mxu0
        %v1130 = vadd.f32 %v1107, %v1129
        %1131 = vdwg.mxu0
        %1132 = vst.msk [vmem:[%s274] sm:$0xff] %vm284, %v1130
        %s1133 = sand.u32 %s141, 1
        %s1134 = scalar_lea.sflag [#allocation4], %s1133
        %s1135 = sand.u32 %s141, 1
        %s1136 = smul.addr %s1135, 8
        %s1137 = scalar_lea.vmem [#allocation8], %s1136
        // Predicated region
        $region53: #{tpu_custom_call.1} parent=39 // pred_check
          %p1138 = pneg %p151
        $region54: #{tpu_custom_call.1} parent=39 // pred_check_branch
          %1140 = sbr.rel (%p1138) target = $region56
        $region55: #{tpu_custom_call.1} parent=39 // pred_region
          %1142 = vsyncadd %s1134, 0
          %s1143 = smul.addr %s23, 8
          %s1144 = scalar_lea.hbm %s5, %s1143
          %s1146 = sshll.u32 %s1137, 4
          %s1147 = int_to_ptr.vmem [resolvable:$true] %s1146
          %s1148 = sshll.u32 %s1144, 4
          %s1149 = int_to_ptr.hbm [resolvable:$true] %s1148
          %1151 = dma.vmem_to_hbm [thread:$0]  %s1147, 128, %s1149, %s1134
        $region56: #{tpu_custom_call.1} parent=39 // pred_fallthru
          _
      $region40: #{tpu_custom_call.1} parent=5 // pred_fallthru
        _
      %p1152 = scmp.le.s32.totalorder 2, %s18
      // Predicated region
      $region57: #{tpu_custom_call.1} parent=5 // pred_check
        %p1153 = pneg %p1152
      $region58: #{tpu_custom_call.1} parent=5 // pred_check_branch
        %1155 = sbr.rel (%p1153) target = $region60
      $region59: #{tpu_custom_call.1} parent=5 // pred_region
        %s1156 = ssub.s32 %s18, 2
        // Predicated region
        $region61: #{tpu_custom_call.1} parent=59 // pred_check
          %p1157 = pneg %p157
        $region62: #{tpu_custom_call.1} parent=59 // pred_check_branch
          %1159 = sbr.rel (%p1157) target = $region64
        $region63: #{tpu_custom_call.1} parent=59 // pred_region
          %s1160 = sand.u32 %s142, 1
          %s1161 = scalar_lea.sflag [#allocation4], %s1160
          %s1162 = sand.u32 %s142, 1
          %s1163 = smul.addr %s1162, 8
          %s1164 = scalar_lea.vmem [#allocation8], %s1163
          %1166 = dma.done %s1161, 128
        $region64: #{tpu_custom_call.1} parent=59 // pred_fallthru
          _
      $region60: #{tpu_custom_call.1} parent=5 // pred_fallthru
        _
    $region6: #{tpu_custom_call.1} parent=1 // loop_footer
      %s22 = sadd.s32 1, %s18
    $region7: #{tpu_custom_call.1} parent=1 // loop_footer_branch
      %17 = sbr.rel target = $region3
    $region8: #{tpu_custom_call.1} parent=1 // loop_exit
      _
    %1167 = vsyncpa [#allocation3], 1
    %s1168 = scalar_lea.sflag [#allocation3], 1
    %1169 = vsyncpa %s1168, 1
    %1170 = vsyncpa [#allocation6], 1
    %1171 = vsyncpa [#allocation4], 1
    %s1172 = scalar_lea.sflag [#allocation4], 1
    %1173 = vsyncpa %s1172, 1

</llo_original>
